<compile_context>
chip_gen: v7x
topology: tpu7x:2x2x1
jax: 0.10.0
libtpu: 0.0.40
codegen_flags: <defaults>
</compile_context>

<pallas_src>
import functools

import jax
import jax.numpy as jnp
from jax import lax
from jax.experimental import pallas as pl
from jax.experimental.pallas import tpu as pltpu


def _round_up(a, b):
    return ((a + b - 1) // b) * b


def _sublane_multiple(dtype):
    # f32 -> 8, bf16 -> 16, int8 -> 32 (packed sublane tiling).
    return 8 * max(1, 4 // jnp.dtype(dtype).itemsize)


def _wbce_kernel(p_ref, t_ref, bce_acc_ref, t_acc_ref, *,
                 n, blk, steps, binary_targets):
    c = pl.program_id(0)   # core axis ("parallel")
    i = pl.program_id(1)   # reduction axis ("arbitrary")

    @pl.when(i == 0)
    def _():
        bce_acc_ref[...] = jnp.zeros_like(bce_acc_ref)
        t_acc_ref[...] = jnp.zeros_like(t_acc_ref)

    p = p_ref[...].astype(jnp.float32)
    t = t_ref[...].astype(jnp.float32)

    # Intended (un-clamped) global element index of each slot in this tile.
    # Fully-out-of-range tiles (clamped onto the last real tile by the input
    # index_map) and the ragged tail / garbage rows of the last partial block
    # all end up with gidx >= n and contribute exactly zero.
    tile = c * steps + i
    row = lax.broadcasted_iota(jnp.int32, (blk, 128), 0)
    col = lax.broadcasted_iota(jnp.int32, (blk, 128), 1)
    gidx = tile * (blk * 128) + row * 128 + col
    valid = gidx < n

    if binary_targets:
        # Hard {0,1} targets: one log per element instead of two (EUP relief,
        # matters most on v7x where HBM is no longer the bottleneck).
        q = jnp.where(t >= 0.5, p, 1.0 - p)
        bce = -jnp.maximum(jnp.log(q), -100.0)
    else:
        # Exact nn.BCELoss elementwise formula (log clamped at -100 before the
        # multiply, so t=0/1 never sees 0*(-inf)).
        log_p = jnp.maximum(jnp.log(p), -100.0)
        log_1mp = jnp.maximum(jnp.log(1.0 - p), -100.0)
        bce = -(t * log_p + (1.0 - t) * log_1mp)

    bce = jnp.where(valid, bce, 0.0)
    t = jnp.where(valid, t, 0.0)

    # (blk,128) -> (blk//8, 8, 128), sum over the leading axis: a tree of
    # vreg-wise VALU adds (no cross-lane/XLU work) into the small resident
    # (8,128) accumulators.
    bce_acc_ref[...] += bce.reshape(blk // 8, 8, 128).sum(axis=0)
    t_acc_ref[...] += t.reshape(blk // 8, 8, 128).sum(axis=0)


def weighted_bce_loss(inputs, targets, weight_fp=1.0, weight_fn=2.0,
                      assume_binary_targets=False, num_cores=2, blk_max=4096):
    """Pallas-backed equivalent of WeightedBCELoss.forward (returns a scalar)."""
    n = int(inputs.size)
    x = inputs.reshape(-1)
    t = targets.reshape(-1)

    sub = max(_sublane_multiple(x.dtype), _sublane_multiple(t.dtype))

    # Rows of 128 lanes.  Only pad the last partial 128-lane row (and tiny
    # inputs smaller than one (sub,128) tile); typical image tensors have
    # n % 128 == 0 and take the zero-copy path.  Pad values (p=1,t=1) are
    # masked in-kernel anyway, so no host-side correction is needed.
    m = max(pl.cdiv(n, 128), sub)
    pad = m * 128 - n
    if pad:
        x = jnp.concatenate([x, jnp.ones((pad,), x.dtype)])
        t = jnp.concatenate([t, jnp.ones((pad,), t.dtype)])
    p2 = x.reshape(m, 128)
    t2 = t.reshape(m, 128)

    # Tile geometry: blk rows x 128 lanes.  blk is a multiple of the sublane
    # packing requirement of the input dtypes and is capped at blk_max
    # (4096 rows of f32 = 2 MiB per input per buffer -> ~8 MiB double-buffered,
    # fits the default scoped VMEM on v5e/v6e/v7x).
    blk = min(blk_max, _round_up(pl.cdiv(m, num_cores), sub))
    n_tiles = pl.cdiv(m, blk)
    steps = pl.cdiv(n_tiles, num_cores)
    grid = (num_cores, steps)

    def in_map(c, i):
        # Clamp tiles that fall entirely past the end of the data onto the last
        # real tile; their contribution is zeroed in-kernel by the gidx mask.
        return (jnp.minimum(c * steps + i, n_tiles - 1), 0)

    kernel = functools.partial(
        _wbce_kernel, n=n, blk=blk, steps=steps,
        binary_targets=bool(assume_binary_targets))

    bce_acc, t_acc = pl.pallas_call(
        kernel,
        out_shape=(
            jax.ShapeDtypeStruct((num_cores * 8, 128), jnp.float32),
            jax.ShapeDtypeStruct((num_cores * 8, 128), jnp.float32),
        ),
        grid=grid,
        in_specs=[
            pl.BlockSpec((blk, 128), in_map),
            pl.BlockSpec((blk, 128), in_map),
        ],
        out_specs=(
            pl.BlockSpec((8, 128), lambda c, i: (c, 0)),
            pl.BlockSpec((8, 128), lambda c, i: (c, 0)),
        ),
        compiler_params=pltpu.CompilerParams(
            dimension_semantics=("parallel", "arbitrary"),
        ),
        cost_estimate=pl.CostEstimate(
            flops=12 * m * 128,
            transcendentals=(1 if assume_binary_targets else 2) * m * 128,
            bytes_accessed=(p2.size * p2.dtype.itemsize
                            + t2.size * t2.dtype.itemsize
                            + 2 * num_cores * 8 * 128 * 4),
        ),
    )(p2, t2)

    # Tiny epilogue (fuses into one small XLA kernel): finish the 2x(16,128)
    # reductions and reconstruct the weighted mean exactly.
    n_f = jnp.float32(n)
    bce_sum = jnp.sum(bce_acc)
    t_sum = jnp.sum(t_acc)

    bce_mean = bce_sum / n_f                       # nn.BCELoss() scalar (mean reduction)
    w_mean = (weight_fn * t_sum + weight_fp * (n_f - t_sum)) / n_f
    # loss.mean() == bce_mean * mean(t*wfn + (1-t)*wfp)
    return bce_mean * w_mean


def _reference(inputs, targets, weight_fp=1.0, weight_fn=2.0):
    p = inputs.astype(jnp.float32)
    t = targets.astype(jnp.float32)
    log_p = jnp.maximum(jnp.log(p), -100.0)
    log_1mp = jnp.maximum(jnp.log(1.0 - p), -100.0)
    bce = jnp.mean(-(t * log_p + (1.0 - t) * log_1mp))
    loss = t * weight_fn * bce + (1.0 - t) * weight_fp * bce
    return jnp.mean(loss)


if __name__ == "__main__":
    key = jax.random.PRNGKey(0)
    k1, k2, k3, k4, k5, k6 = jax.random.split(key, 6)

    # Main test: NCHW probabilities, binary targets (2*4*16*16 = 2048 elements).
    B, C, H, W = 2, 4, 16, 16
    inputs = jax.nn.sigmoid(jax.random.normal(k1, (B, C, H, W), dtype=jnp.float32))
    targets = jax.random.bernoulli(k2, 0.3, (B, C, H, W)).astype(jnp.float32)

    ref = _reference(inputs, targets, weight_fp=1.0, weight_fn=2.0)

    # Default (exact nn.BCELoss) path.
    out = jax.block_until_ready(
        weighted_bce_loss(inputs, targets, weight_fp=1.0, weight_fn=2.0))
    assert jnp.allclose(out, ref, rtol=1e-3, atol=1e-6), (out, ref)

    # One-log fast path (valid because these targets are hard {0,1}).
    out_bin = jax.block_until_ready(
        weighted_bce_loss(inputs, targets, weight_fp=1.0, weight_fn=2.0,
                          assume_binary_targets=True))
    assert jnp.allclose(out_bin, ref, rtol=1e-3, atol=1e-6), (out_bin, ref)

    # Ragged shape (600 elements) exercises the in-kernel tail mask.
    inputs2 = jax.nn.sigmoid(jax.random.normal(k3, (2, 3, 10, 10), dtype=jnp.float32))
    targets2 = jax.random.bernoulli(k4, 0.5, (2, 3, 10, 10)).astype(jnp.float32)
    out2 = jax.block_until_ready(
        weighted_bce_loss(inputs2, targets2, weight_fp=1.0, weight_fn=2.0))
    ref2 = _reference(inputs2, targets2, weight_fp=1.0, weight_fn=2.0)
    assert jnp.allclose(out2, ref2, rtol=1e-3, atol=1e-6), (out2, ref2)

    # Multi-step accumulation test: small blk_max forces steps > 1 on both
    # cores, exercising the resident-accumulator path across grid iterations.
    inputs3 = jax.nn.sigmoid(jax.random.normal(k5, (2, 4, 32, 32), dtype=jnp.float32))
    targets3 = jax.random.bernoulli(k6, 0.4, (2, 4, 32, 32)).astype(jnp.float32)
    out3 = jax.block_until_ready(
        weighted_bce_loss(inputs3, targets3, weight_fp=1.0, weight_fn=2.0,
                          blk_max=8))
    ref3 = _reference(inputs3, targets3, weight_fp=1.0, weight_fn=2.0)
    assert jnp.allclose(out3, ref3, rtol=1e-3, atol=1e-6), (out3, ref3)

    print("KERNEL_OK")
</pallas_src>

<mosaic_0001>
module attributes {stable_mosaic.version = 11 : i64} {
  func.func @_wbce_kernel(%arg0: i32, %arg1: i32, %arg2: memref<8x128xf32, #tpu.memory_space<vmem>>, %arg3: memref<8x128xf32, #tpu.memory_space<vmem>>, %arg4: memref<8x128xf32, #tpu.memory_space<vmem>>, %arg5: memref<8x128xf32, #tpu.memory_space<vmem>>) attributes {dimension_semantics = [#tpu.dimension_semantics<parallel>, #tpu.dimension_semantics<arbitrary>], iteration_bounds = array<i64: 2, 1>, scalar_prefetch = 0 : i64, scratch_operands = 0 : i64, tpu.core_type = #tpu.core_type<tc>, window_params = [{transform_indices = @transform_0, window_bounds = array<i64: 8, 128>}, {transform_indices = @transform_1, window_bounds = array<i64: 8, 128>}, {transform_indices = @transform_2, window_bounds = array<i64: 8, 128>}, {transform_indices = @transform_3, window_bounds = array<i64: 8, 128>}]} {
    %c0_i32 = arith.constant 0 : i32
    %0 = arith.cmpi eq, %arg1, %c0_i32 : i32
    %1 = arith.extui %0 : i1 to i32
    %c0_i32_0 = arith.constant 0 : i32
    %2 = arith.cmpi ne, %1, %c0_i32_0 : i32
    scf.if %2 {
      %cst_20 = arith.constant 0.000000e+00 : f32
      %46 = vector.broadcast %cst_20 : f32 to vector<8x128xf32>
      %c0_21 = arith.constant 0 : index
      %c0_22 = arith.constant 0 : index
      %47 = vector.load %arg4[%c0_21, %c0_22] : memref<8x128xf32, #tpu.memory_space<vmem>>, vector<8x128xf32>
      tpu.vector_store %arg4[%c0_21, %c0_22], %46 {strides = array<i32>} : memref<8x128xf32, #tpu.memory_space<vmem>>, vector<8x128xf32>,
      %cst_23 = arith.constant 0.000000e+00 : f32
      %48 = vector.broadcast %cst_23 : f32 to vector<8x128xf32>
      %c0_24 = arith.constant 0 : index
      %c0_25 = arith.constant 0 : index
      %49 = vector.load %arg5[%c0_24, %c0_25] : memref<8x128xf32, #tpu.memory_space<vmem>>, vector<8x128xf32>
      tpu.vector_store %arg5[%c0_24, %c0_25], %48 {strides = array<i32>} : memref<8x128xf32, #tpu.memory_space<vmem>>, vector<8x128xf32>,
    } else {
    }
    %c0 = arith.constant 0 : index
    %c0_1 = arith.constant 0 : index
    %3 = vector.load %arg2[%c0, %c0_1] : memref<8x128xf32, #tpu.memory_space<vmem>>, vector<8x128xf32>
    %c0_2 = arith.constant 0 : index
    %c0_3 = arith.constant 0 : index
    %4 = vector.load %arg3[%c0_2, %c0_3] : memref<8x128xf32, #tpu.memory_space<vmem>>, vector<8x128xf32>
    %c1_i32 = arith.constant 1 : i32
    %5 = arith.muli %arg0, %c1_i32 : i32
    %6 = arith.addi %5, %arg1 : i32
    %7 = tpu.iota {dimensions = array<i32: 0>} : vector<8x128xi32>
    %8 = tpu.iota {dimensions = array<i32: 1>} : vector<8x128xi32>
    %c1024_i32 = arith.constant 1024 : i32
    %9 = arith.muli %6, %c1024_i32 : i32
    %c128_i32 = arith.constant 128 : i32
    %10 = vector.broadcast %c128_i32 : i32 to vector<8x128xi32>
    %11 = arith.muli %7, %10 : vector<8x128xi32>
    %12 = vector.broadcast %9 : i32 to vector<8x128xi32>
    %13 = arith.addi %12, %11 : vector<8x128xi32>
    %14 = arith.addi %13, %8 : vector<8x128xi32>
    %c2048_i32 = arith.constant 2048 : i32
    %15 = vector.broadcast %c2048_i32 : i32 to vector<8x128xi32>
    %16 = arith.cmpi slt, %14, %15 : vector<8x128xi32>
    %17 = math.log %3 : vector<8x128xf32>
    %cst = arith.constant -1.000000e+02 : f32
    %18 = vector.broadcast %cst : f32 to vector<8x128xf32>
    %19 = arith.maximumf %17, %18 : vector<8x128xf32>
    %cst_4 = arith.constant 1.000000e+00 : f32
    %20 = vector.broadcast %cst_4 : f32 to vector<8x128xf32>
    %21 = arith.subf %20, %3 : vector<8x128xf32>
    %22 = math.log %21 : vector<8x128xf32>
    %cst_5 = arith.constant -1.000000e+02 : f32
    %23 = vector.broadcast %cst_5 : f32 to vector<8x128xf32>
    %24 = arith.maximumf %22, %23 : vector<8x128xf32>
    %25 = arith.mulf %4, %19 : vector<8x128xf32>
    %cst_6 = arith.constant 1.000000e+00 : f32
    %26 = vector.broadcast %cst_6 : f32 to vector<8x128xf32>
    %27 = arith.subf %26, %4 : vector<8x128xf32>
    %28 = arith.mulf %27, %24 : vector<8x128xf32>
    %29 = arith.addf %25, %28 : vector<8x128xf32>
    %cst_7 = arith.constant 0.000000e+00 : f32
    %30 = vector.broadcast %cst_7 : f32 to vector<8x128xf32>
    %31 = arith.subf %30, %29 : vector<8x128xf32>
    %cst_8 = arith.constant 0.000000e+00 : f32
    %32 = vector.broadcast %cst_8 : f32 to vector<8x128xf32>
    %33 = arith.select %16, %31, %32 : vector<8x128xi1>, vector<8x128xf32>
    %cst_9 = arith.constant 0.000000e+00 : f32
    %34 = vector.broadcast %cst_9 : f32 to vector<8x128xf32>
    %35 = arith.select %16, %4, %34 : vector<8x128xi1>, vector<8x128xf32>
    %c0_10 = arith.constant 0 : index
    %c0_11 = arith.constant 0 : index
    %36 = vector.load %arg4[%c0_10, %c0_11] : memref<8x128xf32, #tpu.memory_space<vmem>>, vector<8x128xf32>
    %37 = vector.shape_cast %33 : vector<8x128xf32> to vector<1x8x128xf32>
    %cst_12 = arith.constant dense<0.000000e+00> : vector<8x128xf32>
    %38 = vector.multi_reduction <add>, %37, %cst_12 [0] : vector<1x8x128xf32> to vector<8x128xf32>
    %39 = arith.addf %36, %38 : vector<8x128xf32>
    %c0_13 = arith.constant 0 : index
    %c0_14 = arith.constant 0 : index
    %40 = vector.load %arg4[%c0_13, %c0_14] : memref<8x128xf32, #tpu.memory_space<vmem>>, vector<8x128xf32>
    tpu.vector_store %arg4[%c0_13, %c0_14], %39 {strides = array<i32>} : memref<8x128xf32, #tpu.memory_space<vmem>>, vector<8x128xf32>,
    %c0_15 = arith.constant 0 : index
    %c0_16 = arith.constant 0 : index
    %41 = vector.load %arg5[%c0_15, %c0_16] : memref<8x128xf32, #tpu.memory_space<vmem>>, vector<8x128xf32>
    %42 = vector.shape_cast %35 : vector<8x128xf32> to vector<1x8x128xf32>
    %cst_17 = arith.constant dense<0.000000e+00> : vector<8x128xf32>
    %43 = vector.multi_reduction <add>, %42, %cst_17 [0] : vector<1x8x128xf32> to vector<8x128xf32>
    %44 = arith.addf %41, %43 : vector<8x128xf32>
    %c0_18 = arith.constant 0 : index
    %c0_19 = arith.constant 0 : index
    %45 = vector.load %arg5[%c0_18, %c0_19] : memref<8x128xf32, #tpu.memory_space<vmem>>, vector<8x128xf32>
    tpu.vector_store %arg5[%c0_18, %c0_19], %44 {strides = array<i32>} : memref<8x128xf32, #tpu.memory_space<vmem>>, vector<8x128xf32>,
    return
  }
  func.func @transform_0(%arg0: i32, %arg1: i32) -> (i32, i32) {
    %c1_i32 = arith.constant 1 : i32
    %0 = arith.muli %arg0, %c1_i32 : i32
    %1 = arith.addi %0, %arg1 : i32
    %c1_i32_0 = arith.constant 1 : i32
    %2 = arith.minsi %1, %c1_i32_0 : i32
    %c0_i32 = arith.constant 0 : i32
    %c0_i32_1 = arith.constant 0 : i32
    return %2, %c0_i32 : i32, i32
  }
  func.func @transform_1(%arg0: i32, %arg1: i32) -> (i32, i32) {
    %c1_i32 = arith.constant 1 : i32
    %0 = arith.muli %arg0, %c1_i32 : i32
    %1 = arith.addi %0, %arg1 : i32
    %c1_i32_0 = arith.constant 1 : i32
    %2 = arith.minsi %1, %c1_i32_0 : i32
    %c0_i32 = arith.constant 0 : i32
    %c0_i32_1 = arith.constant 0 : i32
    return %2, %c0_i32 : i32, i32
  }
  func.func @transform_2(%arg0: i32, %arg1: i32) -> (i32, i32) {
    %c0_i32 = arith.constant 0 : i32
    %c0_i32_0 = arith.constant 0 : i32
    return %arg0, %c0_i32 : i32, i32
  }
  func.func @transform_3(%arg0: i32, %arg1: i32) -> (i32, i32) {
    %c0_i32 = arith.constant 0 : i32
    %c0_i32_0 = arith.constant 0 : i32
    return %arg0, %c0_i32 : i32, i32
  }
}

</mosaic_0001>

<llo_original>
// kernel: tpu_custom_call.1
$region0: #{tpu_custom_call.1}
  #allocation0 [shape = 'u32[]', space=smem, size = 0x4, offset = 0x4, fixed_abs, tag = 'smem constant byte address 0x4 - core index']
  #allocation1 [shape = 'u32[144,128]{1,0:T(1,128)}', space=vmem, size = 0x12000, scoped, tag = 'internal scratch']
  %s0 = inlined_call_operand.hbm [shape: f32[16,128], index: 0, kind: input, shape index: {}]
  %s1 = inlined_call_operand.hbm [shape: f32[16,128], index: 1, kind: input, shape index: {}]
  %s2 = inlined_call_operand.hbm [shape: f32[16,128], index: 2, kind: output, shape index: {0}]
  %s3 = inlined_call_operand.hbm [shape: f32[16,128], index: 3, kind: output, shape index: {1}]
  %4 = xla_tuple %s2, %s3
  %s5 = sld [smem:[#allocation0]]
  $region61: #{tpu_custom_call.1} parent=0
    _
  %s7 = ssub.s32 1, %s5
  %s8 = scalar_select 0, %s7, %s5
  $region1: #{tpu_custom_call.1} parent=0
    #allocation2 [shape = 'u8[8192]{0}', space=vmem, size = 0x2000, scoped, tag = 'input window, operand 0']
    #allocation3 [shape = 's32[2]{0}', space=sflag, size = 0x8, scoped, tag = 'scoped memory for tpu_custom_call.1']
    #allocation4 [shape = 's32[2]{0}', space=sflag, size = 0x8, scoped, tag = 'scoped memory for tpu_custom_call.1']
    #allocation5 [shape = 'u8[8192]{0}', space=vmem, size = 0x2000, scoped, tag = 'input window, operand 1']
    #allocation6 [shape = 's32[2]{0}', space=sflag, size = 0x8, scoped, tag = 'scoped memory for tpu_custom_call.1']
    #allocation7 [shape = 'u8[8192]{0}', space=vmem, size = 0x2000, scoped, tag = 'output window, operand 0']
    #allocation8 [shape = 'u8[8192]{0}', space=vmem, size = 0x2000, scoped, tag = 'output window, operand 1']
    #allocation9 [shape = 's32[2]{0}', space=sflag, size = 0x8, scoped, tag = 'scoped memory for tpu_custom_call.1']
    %9 = vsyncpa [#allocation3], 0
    %s10 = scalar_lea.sflag [#allocation3], 1
    %11 = vsyncpa %s10, 0
    %12 = vsyncpa [#allocation6], 0
    %s13 = scalar_lea.sflag [#allocation6], 1
    %14 = vsyncpa %s13, 0
    %15 = vsyncpa [#allocation4], 0
    %s16 = scalar_lea.sflag [#allocation4], 1
    %17 = vsyncpa %s16, 0
    %18 = vsyncpa [#allocation9], 0
    %s19 = scalar_lea.sflag [#allocation9], 1
    %20 = vsyncpa %s19, 0
    loop: start=0, step=1, limit=4
    $region2: #{tpu_custom_call.1} parent=1 // loop_pre_header
      _
    $region3: #{tpu_custom_call.1} parent=1 // loop_header
      %s22 = sphi 0, %s26
      %p23 = scmp.ge.s32.totalorder %s22, 4
      %s29 = sphi 0, %s41
      %s30 = sphi 0, %s37
      %s31 = sphi 0, %s29
      %s32 = sphi 0, %s30
      %s33 = sphi 0, %s31
      %s34 = sphi 0, %s32
      %s50 = sphi 0, %s52
      %s53 = sphi 0, %s50
      %s54 = sphi 0, %s53
      %s70 = sphi 0, %s54
      %s82 = sphi 0, %s84
      %s85 = sphi 0, %s82
      %s86 = sphi 0, %s85
      %s102 = sphi 0, %s86
      %s108 = sphi 0, %s110
      %s111 = sphi 0, %s108
      %s112 = sphi 0, %s111
      %s128 = sphi 0, %s112
      %s134 = sphi 0, %s136
      %s137 = sphi 0, %s134
      %s138 = sphi 0, %s137
      %s154 = sphi 0, %s138
    $region4: #{tpu_custom_call.1} parent=1 // loop_header_branch
      %25 = sbr.rel (%p23) target = $region8
    $region5: #{tpu_custom_call.1} parent=1 // loop_body
      %s27 = ssub.s32 %s22, 1
      %s28 = ssub.s32 %s22, 2
      %s35 = sadd.s32 1, %s30
      %p36 = scmp.ge.s32.totalorder %s35, 1
      %s37 = scalar_select %p36, 0, %s35
      %s38 = sadd.s32 1, %s29
      %s39 = scalar_select %p36, %s38, %s29
      %p40 = scmp.ge.s32.totalorder %s39, 2
      %s41 = scalar_select %p40, 0, %s39
      %s42 = sadd.s32 %s29, %s30
      %p43 = scmp.lt.s32.totalorder %s42, 1
      %s44 = scalar_select %p43, %s42, 1
      %s45 = sadd.s32 %s41, %s37
      %p46 = scmp.lt.s32.totalorder %s45, 1
      %s47 = scalar_select %p46, %s45, 1
      %s48 = ssub.s32 %s44, %s47
      %p49 = scmp.eq.s32.totalorder %s48, 0
      %s51 = sadd.s32 %s50, 1
      %s52 = scalar_select %p49, %s50, %s51
      %p55 = pneg %p49
      %p56 = scmp.eq.s32.totalorder %s22, 1
      %p57 = por %p55, %p56
      %p58 = scmp.ne.s32.totalorder %s50, %s53
      %p59 = scmp.eq.s32.totalorder %s22, 0
      %p60 = por %p58, %p59
      %p61 = scmp.ne.s32.totalorder %s50, %s53
      %p62 = scmp.eq.s32.totalorder %s27, 1
      %p63 = por %p61, %p62
      %p64 = scmp.ne.s32.totalorder %s53, %s54
      %p65 = scmp.eq.s32.totalorder %s27, 0
      %p66 = por %p64, %p65
      %p67 = scmp.ne.s32.totalorder %s53, %s54
      %p68 = scmp.eq.s32.totalorder %s28, 1
      %p69 = por %p67, %p68
      %p71 = scmp.ne.s32.totalorder %s54, %s70
      %p72 = scmp.eq.s32.totalorder %s28, 0
      %p73 = por %p71, %p72
      %s74 = sadd.s32 %s29, %s30
      %p75 = scmp.lt.s32.totalorder %s74, 1
      %s76 = scalar_select %p75, %s74, 1
      %s77 = sadd.s32 %s41, %s37
      %p78 = scmp.lt.s32.totalorder %s77, 1
      %s79 = scalar_select %p78, %s77, 1
      %s80 = ssub.s32 %s76, %s79
      %p81 = scmp.eq.s32.totalorder %s80, 0
      %s83 = sadd.s32 %s82, 1
      %s84 = scalar_select %p81, %s82, %s83
      %p87 = pneg %p81
      %p88 = scmp.eq.s32.totalorder %s22, 1
      %p89 = por %p87, %p88
      %p90 = scmp.ne.s32.totalorder %s82, %s85
      %p91 = scmp.eq.s32.totalorder %s22, 0
      %p92 = por %p90, %p91
      %p93 = scmp.ne.s32.totalorder %s82, %s85
      %p94 = scmp.eq.s32.totalorder %s27, 1
      %p95 = por %p93, %p94
      %p96 = scmp.ne.s32.totalorder %s85, %s86
      %p97 = scmp.eq.s32.totalorder %s27, 0
      %p98 = por %p96, %p97
      %p99 = scmp.ne.s32.totalorder %s85, %s86
      %p100 = scmp.eq.s32.totalorder %s28, 1
      %p101 = por %p99, %p100
      %p103 = scmp.ne.s32.totalorder %s86, %s102
      %p104 = scmp.eq.s32.totalorder %s28, 0
      %p105 = por %p103, %p104
      %s106 = ssub.s32 %s29, %s41
      %p107 = scmp.eq.s32.totalorder %s106, 0
      %s109 = sadd.s32 %s108, 1
      %s110 = scalar_select %p107, %s108, %s109
      %p113 = pneg %p107
      %p114 = scmp.eq.s32.totalorder %s22, 1
      %p115 = por %p113, %p114
      %p116 = scmp.ne.s32.totalorder %s108, %s111
      %p117 = scmp.eq.s32.totalorder %s22, 0
      %p118 = por %p116, %p117
      %p119 = scmp.ne.s32.totalorder %s108, %s111
      %p120 = scmp.eq.s32.totalorder %s27, 1
      %p121 = por %p119, %p120
      %p122 = scmp.ne.s32.totalorder %s111, %s112
      %p123 = scmp.eq.s32.totalorder %s27, 0
      %p124 = por %p122, %p123
      %p125 = scmp.ne.s32.totalorder %s111, %s112
      %p126 = scmp.eq.s32.totalorder %s28, 1
      %p127 = por %p125, %p126
      %p129 = scmp.ne.s32.totalorder %s112, %s128
      %p130 = scmp.eq.s32.totalorder %s28, 0
      %p131 = por %p129, %p130
      %s132 = ssub.s32 %s29, %s41
      %p133 = scmp.eq.s32.totalorder %s132, 0
      %s135 = sadd.s32 %s134, 1
      %s136 = scalar_select %p133, %s134, %s135
      %p139 = pneg %p133
      %p140 = scmp.eq.s32.totalorder %s22, 1
      %p141 = por %p139, %p140
      %p142 = scmp.ne.s32.totalorder %s134, %s137
      %p143 = scmp.eq.s32.totalorder %s22, 0
      %p144 = por %p142, %p143
      %p145 = scmp.ne.s32.totalorder %s134, %s137
      %p146 = scmp.eq.s32.totalorder %s27, 1
      %p147 = por %p145, %p146
      %p148 = scmp.ne.s32.totalorder %s137, %s138
      %p149 = scmp.eq.s32.totalorder %s27, 0
      %p150 = por %p148, %p149
      %p151 = scmp.ne.s32.totalorder %s137, %s138
      %p152 = scmp.eq.s32.totalorder %s28, 1
      %p153 = por %p151, %p152
      %p155 = scmp.ne.s32.totalorder %s138, %s154
      %p156 = scmp.eq.s32.totalorder %s28, 0
      %p157 = por %p155, %p156
      %p158 = scmp.le.s32.totalorder 1, %s22
      %p159 = scmp.lt.s32.totalorder %s22, 3
      %p160 = pnand %p158, %p159
      %p161 = pneg %p160
      // Predicated region
      $region9: #{tpu_custom_call.1} parent=5 // pred_check
        _
      $region10: #{tpu_custom_call.1} parent=5 // pred_check_branch
        %163 = sbr.rel (%p160) target = $region12
      $region11: #{tpu_custom_call.1} parent=5 // pred_region
        %s164 = ssub.s32 %s22, 1
      $region12: #{tpu_custom_call.1} parent=5 // pred_fallthru
        _
      %p165 = scmp.lt.s32.totalorder %s22, 2
      // Predicated region
      $region13: #{tpu_custom_call.1} parent=5 // pred_check
        %p166 = pneg %p165
      $region14: #{tpu_custom_call.1} parent=5 // pred_check_branch
        %168 = sbr.rel (%p166) target = $region16
      $region15: #{tpu_custom_call.1} parent=5 // pred_region
        // Predicated region
        $region17: #{tpu_custom_call.1} parent=15 // pred_check
          %p169 = pneg %p60
        $region18: #{tpu_custom_call.1} parent=15 // pred_check_branch
          %171 = sbr.rel (%p169) target = $region20
        $region19: #{tpu_custom_call.1} parent=15 // pred_region
          %s172 = sand.u32 %s50, 1
          %s173 = scalar_lea.sflag [#allocation3], %s172
          %s174 = sand.u32 %s50, 1
          %s175 = smul.addr %s174, 8
          %s176 = scalar_lea.vmem [#allocation2], %s175
          %s177 = sadd.s32 %s29, %s30
          %p178 = scmp.lt.s32.totalorder %s177, 1
          %s179 = scalar_select %p178, %s177, 1
          %s181 = ssub.s32 128, 128
          %182 = vsyncadd %s173, %s181
          %s183 = smul.addr %s179, 128
          %s184 = scalar_lea.hbm %s0, %s183
          %s186 = sshll.u32 %s176, 4
          %s187 = int_to_ptr.vmem [resolvable:$true] %s186
          %189 = dma.hbm_to_vmem [thread:$0]  %s184, 128, %s187, %s173
        $region20: #{tpu_custom_call.1} parent=15 // pred_fallthru
          _
        // Predicated region
        $region21: #{tpu_custom_call.1} parent=15 // pred_check
          %p190 = pneg %p92
        $region22: #{tpu_custom_call.1} parent=15 // pred_check_branch
          %192 = sbr.rel (%p190) target = $region24
        $region23: #{tpu_custom_call.1} parent=15 // pred_region
          %s193 = sand.u32 %s82, 1
          %s194 = scalar_lea.sflag [#allocation6], %s193
          %s195 = sand.u32 %s82, 1
          %s196 = smul.addr %s195, 8
          %s197 = scalar_lea.vmem [#allocation5], %s196
          %s198 = sadd.s32 %s29, %s30
          %p199 = scmp.lt.s32.totalorder %s198, 1
          %s200 = scalar_select %p199, %s198, 1
          %s202 = ssub.s32 128, 128
          %203 = vsyncadd %s194, %s202
          %s204 = smul.addr %s200, 128
          %s205 = scalar_lea.hbm %s1, %s204
          %s207 = sshll.u32 %s197, 4
          %s208 = int_to_ptr.vmem [resolvable:$true] %s207
          %210 = dma.hbm_to_vmem [thread:$0]  %s205, 128, %s208, %s194
        $region24: #{tpu_custom_call.1} parent=15 // pred_fallthru
          _
      $region16: #{tpu_custom_call.1} parent=5 // pred_fallthru
        _
      %p211 = scmp.le.s32.totalorder 1, %s22
      %p212 = scmp.lt.s32.totalorder %s22, 3
      %p213 = pnand %p211, %p212
      %p214 = pneg %p213
      // Predicated region
      $region25: #{tpu_custom_call.1} parent=5 // pred_check
        _
      $region26: #{tpu_custom_call.1} parent=5 // pred_check_branch
        %216 = sbr.rel (%p213) target = $region28
      $region27: #{tpu_custom_call.1} parent=5 // pred_region
        %s217 = ssub.s32 %s22, 1
        %s218 = sand.u32 %s53, 1
        %s219 = scalar_lea.sflag [#allocation3], %s218
        %s220 = sand.u32 %s53, 1
        %s221 = smul.addr %s220, 8
        %s222 = scalar_lea.vmem [#allocation2], %s221
        // Predicated region
        $region29: #{tpu_custom_call.1} parent=27 // pred_check
          %p223 = pneg %p66
        $region30: #{tpu_custom_call.1} parent=27 // pred_check_branch
          %225 = sbr.rel (%p223) target = $region32
        $region31: #{tpu_custom_call.1} parent=27 // pred_region
          %226 = dma.done %s219, 128
        $region32: #{tpu_custom_call.1} parent=27 // pred_fallthru
          _
        %s227 = sand.u32 %s85, 1
        %s228 = scalar_lea.sflag [#allocation6], %s227
        %s229 = sand.u32 %s85, 1
        %s230 = smul.addr %s229, 8
        %s231 = scalar_lea.vmem [#allocation5], %s230
        // Predicated region
        $region33: #{tpu_custom_call.1} parent=27 // pred_check
          %p232 = pneg %p98
        $region34: #{tpu_custom_call.1} parent=27 // pred_check_branch
          %234 = sbr.rel (%p232) target = $region36
        $region35: #{tpu_custom_call.1} parent=27 // pred_region
          %235 = dma.done %s228, 128
        $region36: #{tpu_custom_call.1} parent=27 // pred_fallthru
          _
        %s236 = sand.u32 %s53, 1
        %s237 = scalar_lea.sflag [#allocation3], %s236
        %s238 = sand.u32 %s53, 1
        %s239 = smul.addr %s238, 8
        %s240 = scalar_lea.vmem [#allocation2], %s239
        %p241 = pneg %p66
        %p242 = pneg %p63
        %s243 = sand.u32 %s85, 1
        %s244 = scalar_lea.sflag [#allocation6], %s243
        %s245 = sand.u32 %s85, 1
        %s246 = smul.addr %s245, 8
        %s247 = scalar_lea.vmem [#allocation5], %s246
        %p248 = pneg %p98
        %p249 = pneg %p95
        %p250 = pneg %p124
        %p251 = pneg %p121
        %s252 = sand.u32 %s111, 1
        %s253 = scalar_lea.sflag [#allocation4], %s252
        %s254 = sand.u32 %s111, 1
        %s255 = smul.addr %s254, 8
        %s256 = scalar_lea.vmem [#allocation7], %s255
        %p257 = pneg %p150
        %p258 = pneg %p147
        %s259 = sand.u32 %s137, 1
        %s260 = scalar_lea.sflag [#allocation9], %s259
        %s261 = sand.u32 %s137, 1
        %s262 = smul.addr %s261, 8
        %s263 = scalar_lea.vmem [#allocation8], %s262
        %s264 = sadd.s32 %s31, %s32
        %p265 = scmp.lt.s32.totalorder %s264, 1
        %s266 = scalar_select %p265, %s264, 1
        %s267 = sadd.s32 %s31, %s32
        %p268 = scmp.lt.s32.totalorder %s267, 1
        %s269 = scalar_select %p268, %s267, 1
        %p270 = scmp.eq.s32.totalorder %s32, 0
        // Predicated region
        $region37: #{tpu_custom_call.1} parent=27 // pred_check
          %p271 = pneg %p270
        $region38: #{tpu_custom_call.1} parent=27 // pred_check_branch
          %273 = sbr.rel (%p271) target = $region40
        $region39: #{tpu_custom_call.1} parent=27 // pred_region
          %274 = vst [vmem:[%s256] sm:$0xff] 0.0
          %275 = vst [vmem:[%s263] sm:$0xff] 0.0
        $region40: #{tpu_custom_call.1} parent=27 // pred_fallthru
          _
        %v276 = vld [vmem:[%s222] sm:$0xff]
        %v277 = vld [vmem:[%s231] sm:$0xff]
        %s278 = sadd.s32 %s31, %s32
        %v279 = vlaneseq
        %v280 = vshrl.u32 %v279, 7
        %v281 = vlaneseq
        %v282 = vand.u32 %v281, 127
        %s283 = smul.u32 %s278, 1024
        %v284 = vmul.u32 %v280, 128
        %v285 = vstv %s283
        %v286 = vadd.s32 %v285, %v284
        %v287 = vadd.s32 %v286, %v282
        %vm288 = vcmp.lt.s32.totalorder %v287, 2048
        %v289 = vlog2.pop %v276
        %v290 = vmul.f32 %v289, 0.6931472
        %v291 = vmax.f32 %v290, -100.0
        %v292 = vsub.f32 1.0, %v276
        %v293 = vlog2.pop %v292
        %v294 = vmul.f32 %v293, 0.6931472
        %v295 = vmax.f32 %v294, -100.0
        %v296 = vmul.f32 %v277, %v291
        %v297 = vsub.f32 1.0, %v277
        %v298 = vmul.f32 %v297, %v295
        %v299 = vadd.f32 %v296, %v298
        %v300 = vsub.f32 0.0, %v299
        %v301 = vsel %vm288, %v300, 0.0
        %v302 = vsel %vm288, %v277, 0.0
        %v303 = vld [vmem:[%s256] sm:$0xff]
        %v304 = vadd.f32 %v301, 0.0
        %v305 = vadd.f32 %v303, %v304
        %306 = vst [vmem:[%s256] sm:$0xff] %v305
        %v307 = vld [vmem:[%s263] sm:$0xff]
        %v308 = vadd.f32 %v302, 0.0
        %v309 = vadd.f32 %v307, %v308
        %310 = vst [vmem:[%s263] sm:$0xff] %v309
        %s311 = sand.u32 %s111, 1
        %s312 = scalar_lea.sflag [#allocation4], %s311
        %s313 = sand.u32 %s111, 1
        %s314 = smul.addr %s313, 8
        %s315 = scalar_lea.vmem [#allocation7], %s314
        %s316 = sand.u32 %s137, 1
        %s317 = scalar_lea.sflag [#allocation9], %s316
        %s318 = sand.u32 %s137, 1
        %s319 = smul.addr %s318, 8
        %s320 = scalar_lea.vmem [#allocation8], %s319
        // Predicated region
        $region41: #{tpu_custom_call.1} parent=27 // pred_check
          %p321 = pneg %p121
        $region42: #{tpu_custom_call.1} parent=27 // pred_check_branch
          %323 = sbr.rel (%p321) target = $region44
        $region43: #{tpu_custom_call.1} parent=27 // pred_region
          %s325 = ssub.s32 128, 128
          %326 = vsyncadd %s312, %s325
          %s327 = smul.addr %s31, 128
          %s328 = scalar_lea.hbm %s2, %s327
          %s330 = sshll.u32 %s315, 4
          %s331 = int_to_ptr.vmem [resolvable:$true] %s330
          %333 = dma.vmem_to_hbm [thread:$0]  %s331, 128, %s328, %s312
        $region44: #{tpu_custom_call.1} parent=27 // pred_fallthru
          _
        // Predicated region
        $region45: #{tpu_custom_call.1} parent=27 // pred_check
          %p334 = pneg %p147
        $region46: #{tpu_custom_call.1} parent=27 // pred_check_branch
          %336 = sbr.rel (%p334) target = $region48
        $region47: #{tpu_custom_call.1} parent=27 // pred_region
          %s338 = ssub.s32 128, 128
          %339 = vsyncadd %s317, %s338
          %s340 = smul.addr %s31, 128
          %s341 = scalar_lea.hbm %s3, %s340
          %s343 = sshll.u32 %s320, 4
          %s344 = int_to_ptr.vmem [resolvable:$true] %s343
          %346 = dma.vmem_to_hbm [thread:$0]  %s344, 128, %s341, %s317
        $region48: #{tpu_custom_call.1} parent=27 // pred_fallthru
          _
      $region28: #{tpu_custom_call.1} parent=5 // pred_fallthru
        _
      %p347 = scmp.le.s32.totalorder 2, %s22
      // Predicated region
      $region49: #{tpu_custom_call.1} parent=5 // pred_check
        %p348 = pneg %p347
      $region50: #{tpu_custom_call.1} parent=5 // pred_check_branch
        %350 = sbr.rel (%p348) target = $region52
      $region51: #{tpu_custom_call.1} parent=5 // pred_region
        %s351 = ssub.s32 %s22, 2
        // Predicated region
        $region53: #{tpu_custom_call.1} parent=51 // pred_check
          %p352 = pneg %p127
        $region54: #{tpu_custom_call.1} parent=51 // pred_check_branch
          %354 = sbr.rel (%p352) target = $region56
        $region55: #{tpu_custom_call.1} parent=51 // pred_region
          %s355 = sand.u32 %s112, 1
          %s356 = scalar_lea.sflag [#allocation4], %s355
          %s357 = sand.u32 %s112, 1
          %s358 = smul.addr %s357, 8
          %s359 = scalar_lea.vmem [#allocation7], %s358
          %360 = dma.done %s356, 128
        $region56: #{tpu_custom_call.1} parent=51 // pred_fallthru
          _
        // Predicated region
        $region57: #{tpu_custom_call.1} parent=51 // pred_check
          %p361 = pneg %p153
        $region58: #{tpu_custom_call.1} parent=51 // pred_check_branch
          %363 = sbr.rel (%p361) target = $region60
        $region59: #{tpu_custom_call.1} parent=51 // pred_region
          %s364 = sand.u32 %s138, 1
          %s365 = scalar_lea.sflag [#allocation9], %s364
          %s366 = sand.u32 %s138, 1
          %s367 = smul.addr %s366, 8
          %s368 = scalar_lea.vmem [#allocation8], %s367
          %369 = dma.done %s365, 128
        $region60: #{tpu_custom_call.1} parent=51 // pred_fallthru
          _
      $region52: #{tpu_custom_call.1} parent=5 // pred_fallthru
        _
    $region6: #{tpu_custom_call.1} parent=1 // loop_footer
      %s26 = sadd.s32 1, %s22
    $region7: #{tpu_custom_call.1} parent=1 // loop_footer_branch
      %21 = sbr.rel target = $region3
    $region8: #{tpu_custom_call.1} parent=1 // loop_exit
      _
    %370 = vsyncpa [#allocation3], 1
    %s371 = scalar_lea.sflag [#allocation3], 1
    %372 = vsyncpa %s371, 1
    %373 = vsyncpa [#allocation6], 1
    %s374 = scalar_lea.sflag [#allocation6], 1
    %375 = vsyncpa %s374, 1
    %376 = vsyncpa [#allocation4], 1
    %s377 = scalar_lea.sflag [#allocation4], 1
    %378 = vsyncpa %s377, 1
    %379 = vsyncpa [#allocation9], 1
    %s380 = scalar_lea.sflag [#allocation9], 1
    %381 = vsyncpa %s380, 1

</llo_original>
